<compile_context>
chip_gen: v6e
topology: v6e:2x2x1
jax: 0.10.0
libtpu: 0.0.40
codegen_flags: <defaults>
</compile_context>

<pallas_src>
import jax
import jax.numpy as jnp
from jax import lax
from jax.experimental import pallas as pl
from jax.experimental.pallas import tpu as pltpu

_LANE = 128                # TPU lane width: vocab and row tiles pad to this.
_MAX_ROWS_PER_TILE = 1024  # fat tiles amortize per-grid-step overhead.


def _round_up(x, m):
    return ((x + m - 1) // m) * m


def _make_kernel(n_valid_rows, vocab, return_logits):
    """Per-tile kernel body (closure over the static sizes)."""

    def kernel(tok_ref, embT_ref, *rest):
        if return_logits:
            idcol_ref, emb_ref, logits_ref, loss_ref = rest
        else:
            (loss_ref,) = rest

        v_pad = embT_ref.shape[0]
        tm = tok_ref.shape[2]

        tok = tok_ref[0]                        # (2, TM) int32, lane-dense
        ids = tok[0:1, :]                       # (1, TM) token ids
        tgt = tok[1:2, :]                       # (1, TM) targets

        # Transposed one-hots: vocab index along sublanes, row index along
        # lanes (sublane iota + lane broadcast -> no transpose of the ids).
        viota = lax.broadcasted_iota(jnp.int32, (v_pad, tm), 0)
        onehot_idx_t = (viota == ids).astype(jnp.float32)        # (V_PAD, TM)
        onehot_tgt_t = (viota == tgt).astype(jnp.float32)        # (V_PAD, TM)

        # logits^T = E^T @ onehot_idx^T: exact embedding-row gather on the MXU.
        logits_t = jnp.dot(embT_ref[...], onehot_idx_t,
                           preferred_element_type=jnp.float32)   # (V_PAD, TM)

        # Softmax statistics over the real vocab only.  When V is sublane
        # aligned, the padded rows (exactly zero, since E^T's padded rows are
        # zero) are simply sliced off; otherwise fall back to the -1e30 mask.
        if vocab % 8 == 0:
            act = logits_t[:vocab, :]                            # (V, TM)
        else:
            act = jnp.where(viota < vocab, logits_t, jnp.float32(-1e30))
        m = jnp.max(act, axis=0, keepdims=True)                  # (1, TM)
        lse = jnp.log(jnp.sum(jnp.exp(act - m), axis=0, keepdims=True))
        tgt_logit = jnp.sum(onehot_tgt_t * logits_t, axis=0, keepdims=True)
        nll = (m + lse) - tgt_logit                              # (1, TM)

        # Zero the contribution of padded rows (global row >= n_valid_rows).
        lane = lax.broadcasted_iota(jnp.int32, (1, tm), 1)
        global_row = pl.program_id(0) * tm + lane
        valid = (global_row < n_valid_rows).astype(jnp.float32)
        loss_ref[0, 0] = jnp.sum(nll * valid)    # per-tile partial sum -> SMEM

        if return_logits:
            # Natural-orientation logits via a second MXU matmul instead of an
            # XLU transpose of logits^T (the XLU slot is the saturated one).
            ids_col = idcol_ref[...]                             # (TM, 1) int32
            liota = lax.broadcasted_iota(jnp.int32, (tm, v_pad), 1)
            onehot_nat = (liota == ids_col).astype(jnp.float32)  # (TM, V_PAD)
            logits_ref[...] = jnp.dot(onehot_nat, emb_ref[...],
                                      preferred_element_type=jnp.float32)

    return kernel


def prepare_bigram_params(emb_table):
    """Pad + pre-transpose the embedding table ONCE, alongside the params."""
    V = emb_table.shape[0]
    v_pad = _round_up(V, _LANE)
    e = emb_table.astype(jnp.float32)
    emb = jnp.zeros((v_pad, v_pad), jnp.float32).at[:V, :V].set(e)       # E
    embT = jnp.zeros((v_pad, v_pad), jnp.float32).at[:V, :V].set(e.T)    # E^T
    return {"emb": emb, "embT": embT, "vocab_size": V}


def bigram_forward(idx, targets, params, *, return_logits=True,
                   unpad_logits=True):
    """Forward pass of BigramLanguageModel: (logits, loss), like the nn.Module."""
    V = params["vocab_size"]
    emb, embT = params["emb"], params["embT"]
    v_pad = embT.shape[0]

    B, T = idx.shape
    N = B * T

    # Fat row tiles, but guarantee >= 2 grid steps whenever N > 128 so v7x's
    # two TensorCores can split the ("parallel",) grid axis.
    tm = min(_MAX_ROWS_PER_TILE, _round_up((N + 1) // 2, _LANE))
    n_pad = _round_up(N, tm)
    g = n_pad // tm

    ids = jnp.zeros((n_pad,), jnp.int32).at[:N].set(
        idx.reshape(-1).astype(jnp.int32))
    tgt = jnp.zeros((n_pad,), jnp.int32).at[:N].set(
        targets.reshape(-1).astype(jnp.int32))
    # ids + targets packed into one small lane-dense DMA per tile.
    tok3 = jnp.stack([ids.reshape(g, tm), tgt.reshape(g, tm)], axis=1)  # (g,2,tm)

    kernel = _make_kernel(N, V, return_logits)

    loss_shape = jax.ShapeDtypeStruct((g, 1), jnp.float32)
    loss_spec = pl.BlockSpec((1, 1), lambda i: (i, 0),
                             memory_space=pltpu.MemorySpace.SMEM)

    in_arrays = [tok3, embT]
    in_specs = [
        pl.BlockSpec((1, 2, tm), lambda i: (i, 0, 0)),       # packed ids+tgts
        pl.BlockSpec((v_pad, v_pad), lambda i: (0, 0)),      # E^T (resident)
    ]
    if return_logits:
        in_arrays += [ids.reshape(n_pad, 1), emb]
        in_specs += [
            pl.BlockSpec((tm, 1), lambda i: (i, 0)),         # ids column
            pl.BlockSpec((v_pad, v_pad), lambda i: (0, 0)),  # E (resident)
        ]
        out_shape = (jax.ShapeDtypeStruct((n_pad, v_pad), jnp.float32),
                     loss_shape)
        out_specs = (pl.BlockSpec((tm, v_pad), lambda i: (i, 0)), loss_spec)
    else:
        out_shape = (loss_shape,)
        out_specs = (loss_spec,)

    outs = pl.pallas_call(
        kernel,
        grid=(g,),
        in_specs=in_specs,
        out_shape=out_shape,
        out_specs=out_specs,
        compiler_params=pltpu.CompilerParams(
            dimension_semantics=("parallel",)),
    )(*in_arrays)

    if return_logits:
        logits_pad, loss_parts = outs
        # The slice is an extra full HBM pass; consumers that can index the
        # padded (n_pad, V_PAD) slab should pass unpad_logits=False.
        logits = logits_pad[:N, :V] if unpad_logits else logits_pad
    else:
        (loss_parts,) = outs
        logits = None

    loss = jnp.sum(loss_parts) / jnp.float32(N)
    return (logits, loss) if return_logits else loss


if __name__ == "__main__":
    vocab_size = 64   # len(chars) in the original script; small / aligned
    B, T = 2, 8

    key = jax.random.PRNGKey(0)
    k_emb, k_idx, k_tgt = jax.random.split(key, 3)

    # nn.Embedding default init is N(0, 1).
    emb_table = jax.random.normal(k_emb, (vocab_size, vocab_size), jnp.float32)
    idx = jax.random.randint(k_idx, (B, T), 0, vocab_size, jnp.int32)
    targets = jax.random.randint(k_tgt, (B, T), 0, vocab_size, jnp.int32)

    params = prepare_bigram_params(emb_table)   # one-time pad + transpose

    logits, loss = bigram_forward(idx, targets, params)
    loss_only = bigram_forward(idx, targets, params, return_logits=False)
    jax.block_until_ready((logits, loss, loss_only))

    # Pure-JAX reference check.
    ref_logits = emb_table[idx.reshape(-1)]
    ref_logp = jax.nn.log_softmax(ref_logits, axis=-1)
    ref_loss = -jnp.mean(ref_logp[jnp.arange(B * T), targets.reshape(-1)])

    assert logits.shape == (B * T, vocab_size)
    assert jnp.allclose(logits, ref_logits, atol=1e-5)
    assert jnp.allclose(loss, ref_loss, atol=1e-4)
    assert jnp.allclose(loss_only, ref_loss, atol=1e-4)

    # TODO(synk): generate() (autoregressive multinomial sampling) is host-side
    # control flow and is not implemented as a kernel.
    print("KERNEL_OK")
</pallas_src>

<mosaic_0001>
module attributes {stable_mosaic.version = 11 : i64} {
  func.func @kernel(%arg0: i32, %arg1: memref<1x2x128xi32, #tpu.memory_space<vmem>>, %arg2: memref<128x128xf32, #tpu.memory_space<vmem>>, %arg3: memref<128x1xi32, #tpu.memory_space<vmem>>, %arg4: memref<128x128xf32, #tpu.memory_space<vmem>>, %arg5: memref<128x128xf32, #tpu.memory_space<vmem>>, %arg6: memref<1x1xf32, #tpu.memory_space<smem>>) attributes {dimension_semantics = [#tpu.dimension_semantics<parallel>], iteration_bounds = array<i64: 1>, scalar_prefetch = 0 : i64, scratch_operands = 0 : i64, tpu.core_type = #tpu.core_type<tc>, window_params = [{transform_indices = @transform_0, window_bounds = array<i64: 1, 2, 128>}, {pipeline_mode = #tpu.pipeline_mode<synchronous>, transform_indices = @transform_1, window_bounds = array<i64: 128, 128>}, {transform_indices = @transform_2, window_bounds = array<i64: 128, 1>}, {pipeline_mode = #tpu.pipeline_mode<synchronous>, transform_indices = @transform_3, window_bounds = array<i64: 128, 128>}, {transform_indices = @transform_4, window_bounds = array<i64: 128, 128>}, {transform_indices = @transform_5, window_bounds = array<i64: 1, 1>}]} {
    %c0 = arith.constant 0 : index
    %c0_0 = arith.constant 0 : index
    %c0_1 = arith.constant 0 : index
    %0 = vector.load %arg1[%c0, %c0_0, %c0_1] : memref<1x2x128xi32, #tpu.memory_space<vmem>>, vector<1x2x128xi32>
    %1 = vector.shape_cast %0 : vector<1x2x128xi32> to vector<2x128xi32>
    %2 = vector.extract_strided_slice %1 {offsets = [0, 0], sizes = [1, 128], strides = [1, 1]} : vector<2x128xi32> to vector<1x128xi32>
    %3 = vector.extract_strided_slice %1 {offsets = [1, 0], sizes = [1, 128], strides = [1, 1]} : vector<2x128xi32> to vector<1x128xi32>
    %4 = tpu.iota {dimensions = array<i32: 0>} : vector<128x128xi32>
    %5 = vector.broadcast %2 : vector<1x128xi32> to vector<128x128xi32>
    %6 = arith.cmpi eq, %4, %5 : vector<128x128xi32>
    %7 = arith.extui %6 : vector<128x128xi1> to vector<128x128xi32>
    %8 = arith.sitofp %7 : vector<128x128xi32> to vector<128x128xf32>
    %9 = vector.broadcast %3 : vector<1x128xi32> to vector<128x128xi32>
    %10 = arith.cmpi eq, %4, %9 : vector<128x128xi32>
    %11 = arith.extui %10 : vector<128x128xi1> to vector<128x128xi32>
    %12 = arith.sitofp %11 : vector<128x128xi32> to vector<128x128xf32>
    %c0_2 = arith.constant 0 : index
    %c0_3 = arith.constant 0 : index
    %13 = vector.load %arg2[%c0_2, %c0_3] : memref<128x128xf32, #tpu.memory_space<vmem>>, vector<128x128xf32>
    %cst = arith.constant dense<0.000000e+00> : vector<128x128xf32>
    %14 = tpu.matmul %13, %8, %cst {dimension_numbers = #tpu.dot_dimension_numbers<[1], [0], [0], [1], [0, 0, 1, 1], [], []>} : vector<128x128xf32>, vector<128x128xf32>, vector<128x128xf32> -> vector<128x128xf32>
    %15 = vector.extract_strided_slice %14 {offsets = [0, 0], sizes = [64, 128], strides = [1, 1]} : vector<128x128xf32> to vector<64x128xf32>
    %cst_4 = arith.constant dense<0xFF800000> : vector<128xf32>
    %16 = vector.multi_reduction <maximumf>, %15, %cst_4 [0] : vector<64x128xf32> to vector<128xf32>
    %17 = vector.shape_cast %16 : vector<128xf32> to vector<1x128xf32>
    %18 = vector.broadcast %17 : vector<1x128xf32> to vector<64x128xf32>
    %19 = arith.subf %15, %18 : vector<64x128xf32>
    %20 = math.exp %19 : vector<64x128xf32>
    %cst_5 = arith.constant dense<0.000000e+00> : vector<128xf32>
    %21 = vector.multi_reduction <add>, %20, %cst_5 [0] : vector<64x128xf32> to vector<128xf32>
    %22 = vector.shape_cast %21 : vector<128xf32> to vector<1x128xf32>
    %23 = math.log %22 : vector<1x128xf32>
    %24 = arith.mulf %12, %14 : vector<128x128xf32>
    %cst_6 = arith.constant dense<0.000000e+00> : vector<128xf32>
    %25 = vector.multi_reduction <add>, %24, %cst_6 [0] : vector<128x128xf32> to vector<128xf32>
    %26 = vector.shape_cast %25 : vector<128xf32> to vector<1x128xf32>
    %27 = arith.addf %17, %23 : vector<1x128xf32>
    %28 = arith.subf %27, %26 : vector<1x128xf32>
    %29 = tpu.iota {dimensions = array<i32: 1>} : vector<1x128xi32>
    %c128_i32 = arith.constant 128 : i32
    %30 = arith.muli %arg0, %c128_i32 : i32
    %31 = vector.broadcast %30 : i32 to vector<1x128xi32>
    %32 = arith.addi %31, %29 : vector<1x128xi32>
    %c16_i32 = arith.constant 16 : i32
    %33 = vector.broadcast %c16_i32 : i32 to vector<1x128xi32>
    %34 = arith.cmpi slt, %32, %33 : vector<1x128xi32>
    %35 = arith.extui %34 : vector<1x128xi1> to vector<1x128xi32>
    %36 = arith.sitofp %35 : vector<1x128xi32> to vector<1x128xf32>
    %37 = arith.mulf %28, %36 : vector<1x128xf32>
    %38 = vector.shape_cast %37 : vector<1x128xf32> to vector<1x1x128xf32>
    %cst_7 = arith.constant dense<0.000000e+00> : vector<1xf32>
    %39 = vector.multi_reduction <add>, %38, %cst_7 [1, 2] : vector<1x1x128xf32> to vector<1xf32>
    %40 = vector.shape_cast %39 : vector<1xf32> to vector<1x1x1xf32>
    %41 = vector.extract %40[0, 0, 0] : f32 from vector<1x1x1xf32>
    %c0_8 = arith.constant 0 : index
    %c0_9 = arith.constant 0 : index
    %42 = memref.load %arg6[%c0_8, %c0_9] : memref<1x1xf32, #tpu.memory_space<smem>>
    memref.store %41, %arg6[%c0_8, %c0_9] : memref<1x1xf32, #tpu.memory_space<smem>>
    %c0_10 = arith.constant 0 : index
    %c0_11 = arith.constant 0 : index
    %43 = vector.load %arg3[%c0_10, %c0_11] : memref<128x1xi32, #tpu.memory_space<vmem>>, vector<128x1xi32>
    %44 = tpu.iota {dimensions = array<i32: 1>} : vector<128x128xi32>
    %45 = vector.broadcast %43 : vector<128x1xi32> to vector<128x128xi32>
    %46 = arith.cmpi eq, %44, %45 : vector<128x128xi32>
    %47 = arith.extui %46 : vector<128x128xi1> to vector<128x128xi32>
    %48 = arith.sitofp %47 : vector<128x128xi32> to vector<128x128xf32>
    %c0_12 = arith.constant 0 : index
    %c0_13 = arith.constant 0 : index
    %49 = vector.load %arg4[%c0_12, %c0_13] : memref<128x128xf32, #tpu.memory_space<vmem>>, vector<128x128xf32>
    %cst_14 = arith.constant dense<0.000000e+00> : vector<128x128xf32>
    %50 = tpu.matmul %48, %49, %cst_14 {dimension_numbers = #tpu.dot_dimension_numbers<[1], [0], [0], [1], [0, 0, 1, 1], [], []>} : vector<128x128xf32>, vector<128x128xf32>, vector<128x128xf32> -> vector<128x128xf32>
    %c0_15 = arith.constant 0 : index
    %c0_16 = arith.constant 0 : index
    %51 = vector.load %arg5[%c0_15, %c0_16] : memref<128x128xf32, #tpu.memory_space<vmem>>, vector<128x128xf32>
    tpu.vector_store %arg5[%c0_15, %c0_16], %50 {strides = array<i32>} : memref<128x128xf32, #tpu.memory_space<vmem>>, vector<128x128xf32>,
    return
  }
  func.func @transform_0(%arg0: i32) -> (i32, i32, i32) {
    %c0_i32 = arith.constant 0 : i32
    %c0_i32_0 = arith.constant 0 : i32
    %c0_i32_1 = arith.constant 0 : i32
    return %arg0, %c0_i32, %c0_i32_0 : i32, i32, i32
  }
  func.func @transform_1(%arg0: i32) -> (i32, i32) {
    %c0_i32 = arith.constant 0 : i32
    %c0_i32_0 = arith.constant 0 : i32
    %c0_i32_1 = arith.constant 0 : i32
    return %c0_i32, %c0_i32_0 : i32, i32
  }
  func.func @transform_2(%arg0: i32) -> (i32, i32) {
    %c0_i32 = arith.constant 0 : i32
    %c0_i32_0 = arith.constant 0 : i32
    return %arg0, %c0_i32 : i32, i32
  }
  func.func @transform_3(%arg0: i32) -> (i32, i32) {
    %c0_i32 = arith.constant 0 : i32
    %c0_i32_0 = arith.constant 0 : i32
    %c0_i32_1 = arith.constant 0 : i32
    return %c0_i32, %c0_i32_0 : i32, i32
  }
  func.func @transform_4(%arg0: i32) -> (i32, i32) {
    %c0_i32 = arith.constant 0 : i32
    %c0_i32_0 = arith.constant 0 : i32
    return %arg0, %c0_i32 : i32, i32
  }
  func.func @transform_5(%arg0: i32) -> (i32, i32) {
    %c0_i32 = arith.constant 0 : i32
    %c0_i32_0 = arith.constant 0 : i32
    return %arg0, %c0_i32 : i32, i32
  }
}

</mosaic_0001>

<llo_original>
// kernel: tpu_custom_call.1
$region0: #{tpu_custom_call.1}
  #allocation0 [shape = 'u32[]', space=smem, size = 0x4, offset = 0x4, fixed_abs, tag = 'smem constant byte address 0x4 - core index']
  #allocation1 [shape = 'u32[144,128]{1,0:T(1,128)}', space=vmem, size = 0x12000, scoped, tag = 'internal scratch']
  %s0 = inlined_call_operand.vmem [shape: s32[1,2,128], index: 0, kind: input, shape index: {}]
  %s1 = inlined_call_operand.vmem [shape: f32[128,128], index: 1, kind: input, shape index: {}]
  %s2 = inlined_call_operand.vmem [shape: s32[128,1], index: 2, kind: input, shape index: {}]
  %s3 = inlined_call_operand.hbm [shape: f32[128,128], index: 3, kind: input, shape index: {}]
  %s4 = inlined_call_operand.hbm [shape: f32[128,128], index: 4, kind: output, shape index: {0}]
  %s5 = inlined_call_operand.hbm [shape: f32[1,1], index: 5, kind: output, shape index: {1}]
  %6 = xla_tuple %s4, %s5
  %s7 = sld [smem:[#allocation0]]
  $region38: #{tpu_custom_call.1} parent=0
    _
  %s9 = ssub.s32 1, %s7
  %s10 = scalar_select 0, %s9, %s7
  $region1: #{tpu_custom_call.1} parent=0
    #allocation2 [shape = 'u8[65536]{0}', space=vmem, size = 0x10000, scoped, tag = 'input window, operand 3, single buffered']
    #allocation3 [shape = 's32[1]{0}', space=sflag, size = 0x4, scoped, tag = 'scoped memory for tpu_custom_call.1']
    #allocation4 [shape = 's32[1]{0}', space=sflag, size = 0x4, scoped, tag = 'scoped memory for tpu_custom_call.1']
    #allocation5 [shape = 's32[1]{0}', space=sflag, size = 0x4, scoped, tag = 'scoped memory for tpu_custom_call.1']
    #allocation6 [shape = 'u8[65536]{0}', space=vmem, size = 0x10000, scoped, tag = 'output window, operand 0, single buffered']
    #allocation7 [shape = 'u8[512]{0}', space=smem, size = 0x200, scoped, tag = 'output window, operand 1, single buffered']
    %11 = vsyncpa [#allocation3], 0
    %12 = vsyncpa [#allocation4], 0
    %13 = vsyncpa [#allocation5], 0
    // Predicated region
    $region2: #{tpu_custom_call.1} parent=1 // pred_check
      _
    $region3: #{tpu_custom_call.1} parent=1 // pred_check_branch
      %15 = sbr.rel (0) target = $region5
    $region4: #{tpu_custom_call.1} parent=1 // pred_region
      _
    $region5: #{tpu_custom_call.1} parent=1 // pred_fallthru
      _
    // Predicated region
    $region6: #{tpu_custom_call.1} parent=1 // pred_check
      _
    $region7: #{tpu_custom_call.1} parent=1 // pred_check_branch
      %17 = sbr.rel (0) target = $region9
    $region8: #{tpu_custom_call.1} parent=1 // pred_region
      _
    $region9: #{tpu_custom_call.1} parent=1 // pred_fallthru
      _
    // Predicated region
    $region10: #{tpu_custom_call.1} parent=1 // pred_check
      _
    $region11: #{tpu_custom_call.1} parent=1 // pred_check_branch
      %19 = sbr.rel (0) target = $region13
    $region12: #{tpu_custom_call.1} parent=1 // pred_region
      _
    $region13: #{tpu_custom_call.1} parent=1 // pred_fallthru
      _
    // Predicated region
    $region14: #{tpu_custom_call.1} parent=1 // pred_check
      _
    $region15: #{tpu_custom_call.1} parent=1 // pred_check_branch
      %21 = sbr.rel (0) target = $region17
    $region16: #{tpu_custom_call.1} parent=1 // pred_region
      %s23 = ssub.s32 2048, 2048
      %24 = vsyncadd [#allocation3], %s23
      %s25 = sshll.u32 [#allocation2], 4
      %s26 = int_to_ptr.vmem [resolvable:$true] %s25
      %31 = dma.hbm_to_vmem [thread:$0]  %s3, 2048, %s26, [#allocation3], 128, 128, 8
    $region17: #{tpu_custom_call.1} parent=1 // pred_fallthru
      _
    // Predicated region
    $region18: #{tpu_custom_call.1} parent=1 // pred_check
      _
    $region19: #{tpu_custom_call.1} parent=1 // pred_check_branch
      %33 = sbr.rel (0) target = $region21
    $region20: #{tpu_custom_call.1} parent=1 // pred_region
      %34 = dma.done [#allocation3], 2048
    $region21: #{tpu_custom_call.1} parent=1 // pred_fallthru
      _
    %v35 = vld [vmem:[%s0] sm:$0x3]
    %v36 = vlaneseq
    %v37 = vshrl.u32 %v36, 7
    %v38 = vadd.s32 %v37, 8
    %v39 = vadd.s32 %v37, 16
    %v40 = vadd.s32 %v37, 24
    %v41 = vadd.s32 %v37, 32
    %v42 = vadd.s32 %v37, 40
    %v43 = vadd.s32 %v37, 48
    %v44 = vadd.s32 %v37, 56
    %v45 = vadd.s32 %v37, 64
    %v46 = vadd.s32 %v37, 72
    %v47 = vadd.s32 %v37, 80
    %v48 = vadd.s32 %v37, 88
    %v49 = vadd.s32 %v37, 96
    %v50 = vadd.s32 %v37, 104
    %v51 = vadd.s32 %v37, 112
    %v52 = vadd.s32 %v37, 120
    %v53 = vlaneseq
    %v54 = vshrl.u32 %v53, 7
    %v55 = vsub.s32 0, %v54
    %v56 = vrot.slane %v35, %v55
    %vm57 = vcmp.eq.s32.totalorder %v37, %v56
    %vm58 = vcmp.eq.s32.totalorder %v38, %v56
    %vm59 = vcmp.eq.s32.totalorder %v39, %v56
    %vm60 = vcmp.eq.s32.totalorder %v40, %v56
    %vm61 = vcmp.eq.s32.totalorder %v41, %v56
    %vm62 = vcmp.eq.s32.totalorder %v42, %v56
    %vm63 = vcmp.eq.s32.totalorder %v43, %v56
    %vm64 = vcmp.eq.s32.totalorder %v44, %v56
    %vm65 = vcmp.eq.s32.totalorder %v45, %v56
    %vm66 = vcmp.eq.s32.totalorder %v46, %v56
    %vm67 = vcmp.eq.s32.totalorder %v47, %v56
    %vm68 = vcmp.eq.s32.totalorder %v48, %v56
    %vm69 = vcmp.eq.s32.totalorder %v49, %v56
    %vm70 = vcmp.eq.s32.totalorder %v50, %v56
    %vm71 = vcmp.eq.s32.totalorder %v51, %v56
    %vm72 = vcmp.eq.s32.totalorder %v52, %v56
    %v73 = vsel %vm57, 1, 0
    %v74 = vsel %vm58, 1, 0
    %v75 = vsel %vm59, 1, 0
    %v76 = vsel %vm60, 1, 0
    %v77 = vsel %vm61, 1, 0
    %v78 = vsel %vm62, 1, 0
    %v79 = vsel %vm63, 1, 0
    %v80 = vsel %vm64, 1, 0
    %v81 = vsel %vm65, 1, 0
    %v82 = vsel %vm66, 1, 0
    %v83 = vsel %vm67, 1, 0
    %v84 = vsel %vm68, 1, 0
    %v85 = vsel %vm69, 1, 0
    %v86 = vsel %vm70, 1, 0
    %v87 = vsel %vm71, 1, 0
    %v88 = vsel %vm72, 1, 0
    %v89 = vcvt.s32.f32 %v73
    %v90 = vcvt.s32.f32 %v74
    %v91 = vcvt.s32.f32 %v75
    %v92 = vcvt.s32.f32 %v76
    %v93 = vcvt.s32.f32 %v77
    %v94 = vcvt.s32.f32 %v78
    %v95 = vcvt.s32.f32 %v79
    %v96 = vcvt.s32.f32 %v80
    %v97 = vcvt.s32.f32 %v81
    %v98 = vcvt.s32.f32 %v82
    %v99 = vcvt.s32.f32 %v83
    %v100 = vcvt.s32.f32 %v84
    %v101 = vcvt.s32.f32 %v85
    %v102 = vcvt.s32.f32 %v86
    %v103 = vcvt.s32.f32 %v87
    %v104 = vcvt.s32.f32 %v88
    %v105 = vlaneseq
    %v106 = vshrl.u32 %v105, 7
    %v107 = vsub.s32 1, %v106
    %v108 = vrot.slane %v35, %v107
    %vm109 = vcmp.eq.s32.totalorder %v37, %v108
    %vm110 = vcmp.eq.s32.totalorder %v38, %v108
    %vm111 = vcmp.eq.s32.totalorder %v39, %v108
    %vm112 = vcmp.eq.s32.totalorder %v40, %v108
    %vm113 = vcmp.eq.s32.totalorder %v41, %v108
    %vm114 = vcmp.eq.s32.totalorder %v42, %v108
    %vm115 = vcmp.eq.s32.totalorder %v43, %v108
    %vm116 = vcmp.eq.s32.totalorder %v44, %v108
    %vm117 = vcmp.eq.s32.totalorder %v45, %v108
    %vm118 = vcmp.eq.s32.totalorder %v46, %v108
    %vm119 = vcmp.eq.s32.totalorder %v47, %v108
    %vm120 = vcmp.eq.s32.totalorder %v48, %v108
    %vm121 = vcmp.eq.s32.totalorder %v49, %v108
    %vm122 = vcmp.eq.s32.totalorder %v50, %v108
    %vm123 = vcmp.eq.s32.totalorder %v51, %v108
    %vm124 = vcmp.eq.s32.totalorder %v52, %v108
    %v125 = vsel %vm109, 1, 0
    %v126 = vsel %vm110, 1, 0
    %v127 = vsel %vm111, 1, 0
    %v128 = vsel %vm112, 1, 0
    %v129 = vsel %vm113, 1, 0
    %v130 = vsel %vm114, 1, 0
    %v131 = vsel %vm115, 1, 0
    %v132 = vsel %vm116, 1, 0
    %v133 = vsel %vm117, 1, 0
    %v134 = vsel %vm118, 1, 0
    %v135 = vsel %vm119, 1, 0
    %v136 = vsel %vm120, 1, 0
    %v137 = vsel %vm121, 1, 0
    %v138 = vsel %vm122, 1, 0
    %v139 = vsel %vm123, 1, 0
    %v140 = vsel %vm124, 1, 0
    %v141 = vcvt.s32.f32 %v125
    %v142 = vcvt.s32.f32 %v126
    %v143 = vcvt.s32.f32 %v127
    %v144 = vcvt.s32.f32 %v128
    %v145 = vcvt.s32.f32 %v129
    %v146 = vcvt.s32.f32 %v130
    %v147 = vcvt.s32.f32 %v131
    %v148 = vcvt.s32.f32 %v132
    %v149 = vcvt.s32.f32 %v133
    %v150 = vcvt.s32.f32 %v134
    %v151 = vcvt.s32.f32 %v135
    %v152 = vcvt.s32.f32 %v136
    %v153 = vcvt.s32.f32 %v137
    %v154 = vcvt.s32.f32 %v138
    %v155 = vcvt.s32.f32 %v139
    %v156 = vcvt.s32.f32 %v140
    %v157 = vld [vmem:[%s1] sm:$0xff]
    %v158 = vld [vmem:[%s1 + $0x8] sm:$0xff]
    %v159 = vld [vmem:[%s1 + $0x10] sm:$0xff]
    %v160 = vld [vmem:[%s1 + $0x18] sm:$0xff]
    %v161 = vld [vmem:[%s1 + $0x20] sm:$0xff]
    %v162 = vld [vmem:[%s1 + $0x28] sm:$0xff]
    %v163 = vld [vmem:[%s1 + $0x30] sm:$0xff]
    %v164 = vld [vmem:[%s1 + $0x38] sm:$0xff]
    %v165 = vld [vmem:[%s1 + $0x40] sm:$0xff]
    %v166 = vld [vmem:[%s1 + $0x48] sm:$0xff]
    %v167 = vld [vmem:[%s1 + $0x50] sm:$0xff]
    %v168 = vld [vmem:[%s1 + $0x58] sm:$0xff]
    %v169 = vld [vmem:[%s1 + $0x60] sm:$0xff]
    %v170 = vld [vmem:[%s1 + $0x68] sm:$0xff]
    %v171 = vld [vmem:[%s1 + $0x70] sm:$0xff]
    %v172 = vld [vmem:[%s1 + $0x78] sm:$0xff]
    %173 = vmatprep.subr.mxu0 0.0
    %174 = vmatpush1.msra.mxu0 %v104
    %175 = vmatprep.subr.mxu0 0.0
    %176 = vmatpush1.msra.mxu0 %v103
    %177 = vmatprep.subr.mxu0 0.0
    %178 = vmatpush1.msra.mxu0 %v102
    %179 = vmatprep.subr.mxu0 0.0
    %180 = vmatpush1.msra.mxu0 %v101
    %181 = vmatprep.subr.mxu0 0.0
    %182 = vmatpush1.msra.mxu0 %v100
    %183 = vmatprep.subr.mxu0 0.0
    %184 = vmatpush1.msra.mxu0 %v99
    %185 = vmatprep.subr.mxu0 0.0
    %186 = vmatpush1.msra.mxu0 %v98
    %187 = vmatprep.subr.mxu0 0.0
    %188 = vmatpush1.msra.mxu0 %v97
    %189 = vmatprep.subr.mxu0 0.0
    %190 = vmatpush1.msra.mxu0 %v96
    %191 = vmatprep.subr.mxu0 0.0
    %192 = vmatpush1.msra.mxu0 %v95
    %193 = vmatprep.subr.mxu0 0.0
    %194 = vmatpush1.msra.mxu0 %v94
    %195 = vmatprep.subr.mxu0 0.0
    %196 = vmatpush1.msra.mxu0 %v93
    %197 = vmatprep.subr.mxu0 0.0
    %198 = vmatpush1.msra.mxu0 %v92
    %199 = vmatprep.subr.mxu0 0.0
    %200 = vmatpush1.msra.mxu0 %v91
    %201 = vmatprep.subr.mxu0 0.0
    %202 = vmatpush1.msra.mxu0 %v90
    %203 = vmatprep.subr.mxu0 0.0
    %204 = vmatpush1.msra.mxu0 %v89
    %205 = vmatprep.subr.mxu0 0.0
    %206 = vmatpush2.msra.mxu0 0.0
    %207 = vmatprep.subr.mxu0 0.0
    %208 = vmatpush2.msra.mxu0 0.0
    %209 = vmatprep.subr.mxu0 0.0
    %210 = vmatpush2.msra.mxu0 0.0
    %211 = vmatprep.subr.mxu0 0.0
    %212 = vmatpush2.msra.mxu0 0.0
    %213 = vmatprep.subr.mxu0 0.0
    %214 = vmatpush2.msra.mxu0 0.0
    %215 = vmatprep.subr.mxu0 0.0
    %216 = vmatpush2.msra.mxu0 0.0
    %217 = vmatprep.subr.mxu0 0.0
    %218 = vmatpush2.msra.mxu0 0.0
    %219 = vmatprep.subr.mxu0 0.0
    %220 = vmatpush2.msra.mxu0 0.0
    %221 = vmatprep.subr.mxu0 0.0
    %222 = vmatpush2.msra.mxu0 0.0
    %223 = vmatprep.subr.mxu0 0.0
    %224 = vmatpush2.msra.mxu0 0.0
    %225 = vmatprep.subr.mxu0 0.0
    %226 = vmatpush2.msra.mxu0 0.0
    %227 = vmatprep.subr.mxu0 0.0
    %228 = vmatpush2.msra.mxu0 0.0
    %229 = vmatprep.subr.mxu0 0.0
    %230 = vmatpush2.msra.mxu0 0.0
    %231 = vmatprep.subr.mxu0 0.0
    %232 = vmatpush2.msra.mxu0 0.0
    %233 = vmatprep.subr.mxu0 0.0
    %234 = vmatpush2.msra.mxu0 0.0
    %235 = vmatprep.subr.mxu0 0.0
    %236 = vmatpush2.msra.mxu0 0.0
    %237 = vmatprep.mubr.f32.mxu0 0.0
    %238 = vmatmul.mubr.f32.gmra.mxu0 %v157
    %v239 = vpop.f32.mrf.mxu0
    %v240 = vadd.f32 0.0, %v239
    %v241 = vpop.f32.mrf.mxu0
    %242 = vmatprep.mubr.f32.mxu0 0.0
    %243 = vmatmul.mubr.f32.gmra.mxu0 %v158
    %v244 = vpop.f32.mrf.mxu0
    %v245 = vadd.f32 0.0, %v244
    %v246 = vpop.f32.mrf.mxu0
    %247 = vmatprep.mubr.f32.mxu0 0.0
    %248 = vmatmul.mubr.f32.gmra.mxu0 %v159
    %v249 = vpop.f32.mrf.mxu0
    %v250 = vadd.f32 0.0, %v249
    %v251 = vpop.f32.mrf.mxu0
    %252 = vmatprep.mubr.f32.mxu0 0.0
    %253 = vmatmul.mubr.f32.gmra.mxu0 %v160
    %v254 = vpop.f32.mrf.mxu0
    %v255 = vadd.f32 0.0, %v254
    %v256 = vpop.f32.mrf.mxu0
    %257 = vmatprep.mubr.f32.mxu0 0.0
    %258 = vmatmul.mubr.f32.gmra.mxu0 %v161
    %v259 = vpop.f32.mrf.mxu0
    %v260 = vadd.f32 0.0, %v259
    %v261 = vpop.f32.mrf.mxu0
    %262 = vmatprep.mubr.f32.mxu0 0.0
    %263 = vmatmul.mubr.f32.gmra.mxu0 %v162
    %v264 = vpop.f32.mrf.mxu0
    %v265 = vadd.f32 0.0, %v264
    %v266 = vpop.f32.mrf.mxu0
    %267 = vmatprep.mubr.f32.mxu0 0.0
    %268 = vmatmul.mubr.f32.gmra.mxu0 %v163
    %v269 = vpop.f32.mrf.mxu0
    %v270 = vadd.f32 0.0, %v269
    %v271 = vpop.f32.mrf.mxu0
    %272 = vmatprep.mubr.f32.mxu0 0.0
    %273 = vmatmul.mubr.f32.gmra.mxu0 %v164
    %v274 = vpop.f32.mrf.mxu0
    %v275 = vadd.f32 0.0, %v274
    %v276 = vpop.f32.mrf.mxu0
    %277 = vmatprep.mubr.f32.mxu0 0.0
    %278 = vmatmul.mubr.f32.gmra.mxu0 %v165
    %v279 = vpop.f32.mrf.mxu0
    %v280 = vadd.f32 0.0, %v279
    %v281 = vpop.f32.mrf.mxu0
    %282 = vmatprep.mubr.f32.mxu0 0.0
    %283 = vmatmul.mubr.f32.gmra.mxu0 %v166
    %v284 = vpop.f32.mrf.mxu0
    %v285 = vadd.f32 0.0, %v284
    %v286 = vpop.f32.mrf.mxu0
    %287 = vmatprep.mubr.f32.mxu0 0.0
    %288 = vmatmul.mubr.f32.gmra.mxu0 %v167
    %v289 = vpop.f32.mrf.mxu0
    %v290 = vadd.f32 0.0, %v289
    %v291 = vpop.f32.mrf.mxu0
    %292 = vmatprep.mubr.f32.mxu0 0.0
    %293 = vmatmul.mubr.f32.gmra.mxu0 %v168
    %v294 = vpop.f32.mrf.mxu0
    %v295 = vadd.f32 0.0, %v294
    %v296 = vpop.f32.mrf.mxu0
    %297 = vmatprep.mubr.f32.mxu0 0.0
    %298 = vmatmul.mubr.f32.gmra.mxu0 %v169
    %v299 = vpop.f32.mrf.mxu0
    %v300 = vadd.f32 0.0, %v299
    %v301 = vpop.f32.mrf.mxu0
    %302 = vmatprep.mubr.f32.mxu0 0.0
    %303 = vmatmul.mubr.f32.gmra.mxu0 %v170
    %v304 = vpop.f32.mrf.mxu0
    %v305 = vadd.f32 0.0, %v304
    %v306 = vpop.f32.mrf.mxu0
    %307 = vmatprep.mubr.f32.mxu0 0.0
    %308 = vmatmul.mubr.f32.gmra.mxu0 %v171
    %v309 = vpop.f32.mrf.mxu0
    %v310 = vadd.f32 0.0, %v309
    %v311 = vpop.f32.mrf.mxu0
    %312 = vmatprep.mubr.f32.mxu0 0.0
    %313 = vmatmul.mubr.f32.gmra.mxu0 %v172
    %v314 = vpop.f32.mrf.mxu0
    %v315 = vadd.f32 0.0, %v314
    %v316 = vpop.f32.mrf.mxu0
    %317 = vdwg.mxu0
    %v318 = vmax.f32 %v240, %v260
    %v319 = vmax.f32 %v245, %v265
    %v320 = vmax.f32 %v250, %v270
    %v321 = vmax.f32 %v255, %v275
    %v322 = vmax.f32 %v318, %v319
    %v323 = vmax.f32 %v320, %v321
    %v324 = vmax.f32 %v322, %v323
    %v325 = vrot.slane %v324, 4
    %v326 = vmax.f32 %v324, %v325
    %v327 = vrot.slane %v326, 2
    %v328 = vmax.f32 %v326, %v327
    %v329 = vrot.slane %v328, 1
    %v330 = vmax.f32 %v328, %v329
    %v331 = vsub.f32 %v240, %v330
    %v332 = vsub.f32 %v245, %v330
    %v333 = vsub.f32 %v250, %v330
    %v334 = vsub.f32 %v255, %v330
    %v335 = vsub.f32 %v260, %v330
    %v336 = vsub.f32 %v265, %v330
    %v337 = vsub.f32 %v270, %v330
    %v338 = vsub.f32 %v275, %v330
    %v339 = vmul.f32 %v331, 1.442695
    %v340 = vpow.pop %v339
    %v341 = vmul.f32 %v332, 1.442695
    %v342 = vpow.pop %v341
    %v343 = vmul.f32 %v333, 1.442695
    %v344 = vpow.pop %v343
    %v345 = vmul.f32 %v334, 1.442695
    %v346 = vpow.pop %v345
    %v347 = vmul.f32 %v335, 1.442695
    %v348 = vpow.pop %v347
    %v349 = vmul.f32 %v336, 1.442695
    %v350 = vpow.pop %v349
    %v351 = vmul.f32 %v337, 1.442695
    %v352 = vpow.pop %v351
    %v353 = vmul.f32 %v338, 1.442695
    %v354 = vpow.pop %v353
    %v355 = vadd.f32 %v340, %v342
    %v356 = vadd.f32 %v355, %v344
    %v357 = vadd.f32 %v356, %v346
    %v358 = vadd.f32 %v357, %v348
    %v359 = vadd.f32 %v358, %v350
    %v360 = vadd.f32 %v359, %v352
    %v361 = vadd.f32 %v360, %v354
    %v362 = vrot.slane %v361, 4
    %v363 = vadd.f32 %v361, %v362
    %v364 = vrot.slane %v363, 2
    %v365 = vadd.f32 %v363, %v364
    %v366 = vrot.slane %v365, 1
    %v367 = vadd.f32 %v365, %v366
    %v368 = vlog2.pop %v367
    %v369 = vmul.f32 %v368, 0.6931472
    %v370 = vmul.f32 %v141, %v240
    %v371 = vmul.f32 %v142, %v245
    %v372 = vmul.f32 %v143, %v250
    %v373 = vmul.f32 %v144, %v255
    %v374 = vmul.f32 %v145, %v260
    %v375 = vmul.f32 %v146, %v265
    %v376 = vmul.f32 %v147, %v270
    %v377 = vmul.f32 %v148, %v275
    %v378 = vmul.f32 %v149, %v280
    %v379 = vmul.f32 %v150, %v285
    %v380 = vmul.f32 %v151, %v290
    %v381 = vmul.f32 %v152, %v295
    %v382 = vmul.f32 %v153, %v300
    %v383 = vmul.f32 %v154, %v305
    %v384 = vmul.f32 %v155, %v310
    %v385 = vmul.f32 %v156, %v315
    %v386 = vadd.f32 %v370, %v371
    %v387 = vadd.f32 %v386, %v372
    %v388 = vadd.f32 %v387, %v373
    %v389 = vadd.f32 %v388, %v374
    %v390 = vadd.f32 %v389, %v375
    %v391 = vadd.f32 %v390, %v376
    %v392 = vadd.f32 %v391, %v377
    %v393 = vadd.f32 %v392, %v378
    %v394 = vadd.f32 %v393, %v379
    %v395 = vadd.f32 %v394, %v380
    %v396 = vadd.f32 %v395, %v381
    %v397 = vadd.f32 %v396, %v382
    %v398 = vadd.f32 %v397, %v383
    %v399 = vadd.f32 %v398, %v384
    %v400 = vadd.f32 %v399, %v385
    %v401 = vrot.slane %v400, 4
    %v402 = vadd.f32 %v400, %v401
    %v403 = vrot.slane %v402, 2
    %v404 = vadd.f32 %v402, %v403
    %v405 = vrot.slane %v404, 1
    %v406 = vadd.f32 %v404, %v405
    %v407 = vadd.f32 %v330, %v369
    %v408 = vsub.f32 %v407, %v406
    %v409 = vlaneseq
    %v410 = vand.u32 %v409, 127
    %s411 = smul.u32 0, 128
    %v412 = vstv %s411
    %v413 = vadd.s32 %v412, %v410
    %vm414 = vcmp.lt.s32.totalorder %v413, 16
    %v415 = vsel %vm414, 1, 0
    %v416 = vcvt.s32.f32 %v415
    %v417 = vmul.f32 %v408, %v416
    %vm418 = vcmask 1040384
    %v419 = vsel %vm418, %v417, 0.0
    %420 = vadd.xlane.f32.xlu0 %v419
    %v421 = vpop.xlane.xlu0 %420
    %v422 = vrot.slane %v421, 4
    %v423 = vadd.f32 %v421, %v422
    %v424 = vrot.slane %v423, 2
    %v425 = vadd.f32 %v423, %v424
    %v426 = vrot.slane %v425, 1
    %v427 = vadd.f32 %v425, %v426
    %s428 = vtos %v427
    %s429 = scalar_lea.smem [#allocation7], 0
    %430 = sst [smem:[%s429]] %s428
    %v431 = vld [vmem:[%s2] sm:$0xff]
    %v432 = vld [vmem:[%s2 + $0x8] sm:$0xff]
    %v433 = vld [vmem:[%s2 + $0x10] sm:$0xff]
    %v434 = vld [vmem:[%s2 + $0x18] sm:$0xff]
    %v435 = vld [vmem:[%s2 + $0x20] sm:$0xff]
    %v436 = vld [vmem:[%s2 + $0x28] sm:$0xff]
    %v437 = vld [vmem:[%s2 + $0x30] sm:$0xff]
    %v438 = vld [vmem:[%s2 + $0x38] sm:$0xff]
    %v439 = vld [vmem:[%s2 + $0x40] sm:$0xff]
    %v440 = vld [vmem:[%s2 + $0x48] sm:$0xff]
    %v441 = vld [vmem:[%s2 + $0x50] sm:$0xff]
    %v442 = vld [vmem:[%s2 + $0x58] sm:$0xff]
    %v443 = vld [vmem:[%s2 + $0x60] sm:$0xff]
    %v444 = vld [vmem:[%s2 + $0x68] sm:$0xff]
    %v445 = vld [vmem:[%s2 + $0x70] sm:$0xff]
    %v446 = vld [vmem:[%s2 + $0x78] sm:$0xff]
    %447 = vset.pattern.permute.xlu0 0
    %448 = vperm.xlu0 %447, %v431
    %v449 = vpop.permute.xlu0 %448
    %450 = vset.pattern.permute.xlu0 0
    %451 = vperm.xlu0 %450, %v432
    %v452 = vpop.permute.xlu0 %451
    %453 = vset.pattern.permute.xlu0 0
    %454 = vperm.xlu0 %453, %v433
    %v455 = vpop.permute.xlu0 %454
    %456 = vset.pattern.permute.xlu0 0
    %457 = vperm.xlu0 %456, %v434
    %v458 = vpop.permute.xlu0 %457
    %459 = vset.pattern.permute.xlu0 0
    %460 = vperm.xlu0 %459, %v435
    %v461 = vpop.permute.xlu0 %460
    %462 = vset.pattern.permute.xlu0 0
    %463 = vperm.xlu0 %462, %v436
    %v464 = vpop.permute.xlu0 %463
    %465 = vset.pattern.permute.xlu0 0
    %466 = vperm.xlu0 %465, %v437
    %v467 = vpop.permute.xlu0 %466
    %468 = vset.pattern.permute.xlu0 0
    %469 = vperm.xlu0 %468, %v438
    %v470 = vpop.permute.xlu0 %469
    %471 = vset.pattern.permute.xlu0 0
    %472 = vperm.xlu0 %471, %v439
    %v473 = vpop.permute.xlu0 %472
    %474 = vset.pattern.permute.xlu0 0
    %475 = vperm.xlu0 %474, %v440
    %v476 = vpop.permute.xlu0 %475
    %477 = vset.pattern.permute.xlu0 0
    %478 = vperm.xlu0 %477, %v441
    %v479 = vpop.permute.xlu0 %478
    %480 = vset.pattern.permute.xlu0 0
    %481 = vperm.xlu0 %480, %v442
    %v482 = vpop.permute.xlu0 %481
    %483 = vset.pattern.permute.xlu0 0
    %484 = vperm.xlu0 %483, %v443
    %v485 = vpop.permute.xlu0 %484
    %486 = vset.pattern.permute.xlu0 0
    %487 = vperm.xlu0 %486, %v444
    %v488 = vpop.permute.xlu0 %487
    %489 = vset.pattern.permute.xlu0 0
    %490 = vperm.xlu0 %489, %v445
    %v491 = vpop.permute.xlu0 %490
    %492 = vset.pattern.permute.xlu0 0
    %493 = vperm.xlu0 %492, %v446
    %v494 = vpop.permute.xlu0 %493
    %vm495 = vcmp.eq.s32.totalorder %v410, %v449
    %vm496 = vcmp.eq.s32.totalorder %v410, %v452
    %vm497 = vcmp.eq.s32.totalorder %v410, %v455
    %vm498 = vcmp.eq.s32.totalorder %v410, %v458
    %vm499 = vcmp.eq.s32.totalorder %v410, %v461
    %vm500 = vcmp.eq.s32.totalorder %v410, %v464
    %vm501 = vcmp.eq.s32.totalorder %v410, %v467
    %vm502 = vcmp.eq.s32.totalorder %v410, %v470
    %vm503 = vcmp.eq.s32.totalorder %v410, %v473
    %vm504 = vcmp.eq.s32.totalorder %v410, %v476
    %vm505 = vcmp.eq.s32.totalorder %v410, %v479
    %vm506 = vcmp.eq.s32.totalorder %v410, %v482
    %vm507 = vcmp.eq.s32.totalorder %v410, %v485
    %vm508 = vcmp.eq.s32.totalorder %v410, %v488
    %vm509 = vcmp.eq.s32.totalorder %v410, %v491
    %vm510 = vcmp.eq.s32.totalorder %v410, %v494
    %v511 = vsel %vm495, 1, 0
    %v512 = vsel %vm496, 1, 0
    %v513 = vsel %vm497, 1, 0
    %v514 = vsel %vm498, 1, 0
    %v515 = vsel %vm499, 1, 0
    %v516 = vsel %vm500, 1, 0
    %v517 = vsel %vm501, 1, 0
    %v518 = vsel %vm502, 1, 0
    %v519 = vsel %vm503, 1, 0
    %v520 = vsel %vm504, 1, 0
    %v521 = vsel %vm505, 1, 0
    %v522 = vsel %vm506, 1, 0
    %v523 = vsel %vm507, 1, 0
    %v524 = vsel %vm508, 1, 0
    %v525 = vsel %vm509, 1, 0
    %v526 = vsel %vm510, 1, 0
    %v527 = vcvt.s32.f32 %v511
    %v528 = vcvt.s32.f32 %v512
    %v529 = vcvt.s32.f32 %v513
    %v530 = vcvt.s32.f32 %v514
    %v531 = vcvt.s32.f32 %v515
    %v532 = vcvt.s32.f32 %v516
    %v533 = vcvt.s32.f32 %v517
    %v534 = vcvt.s32.f32 %v518
    %v535 = vcvt.s32.f32 %v519
    %v536 = vcvt.s32.f32 %v520
    %v537 = vcvt.s32.f32 %v521
    %v538 = vcvt.s32.f32 %v522
    %v539 = vcvt.s32.f32 %v523
    %v540 = vcvt.s32.f32 %v524
    %v541 = vcvt.s32.f32 %v525
    %v542 = vcvt.s32.f32 %v526
    %v543 = vld [vmem:[#allocation2] sm:$0xff]
    %v544 = vld [vmem:[#allocation2 + $0x8] sm:$0xff]
    %v545 = vld [vmem:[#allocation2 + $0x10] sm:$0xff]
    %v546 = vld [vmem:[#allocation2 + $0x18] sm:$0xff]
    %v547 = vld [vmem:[#allocation2 + $0x20] sm:$0xff]
    %v548 = vld [vmem:[#allocation2 + $0x28] sm:$0xff]
    %v549 = vld [vmem:[#allocation2 + $0x30] sm:$0xff]
    %v550 = vld [vmem:[#allocation2 + $0x38] sm:$0xff]
    %v551 = vld [vmem:[#allocation2 + $0x40] sm:$0xff]
    %v552 = vld [vmem:[#allocation2 + $0x48] sm:$0xff]
    %v553 = vld [vmem:[#allocation2 + $0x50] sm:$0xff]
    %v554 = vld [vmem:[#allocation2 + $0x58] sm:$0xff]
    %v555 = vld [vmem:[#allocation2 + $0x60] sm:$0xff]
    %v556 = vld [vmem:[#allocation2 + $0x68] sm:$0xff]
    %v557 = vld [vmem:[#allocation2 + $0x70] sm:$0xff]
    %v558 = vld [vmem:[#allocation2 + $0x78] sm:$0xff]
    %559 = vmatprep.subr.mxu0 0.0
    %560 = vmatpush1.msra.mxu0 %v558
    %561 = vmatprep.subr.mxu0 0.0
    %562 = vmatpush1.msra.mxu0 %v557
    %563 = vmatprep.subr.mxu0 0.0
    %564 = vmatpush1.msra.mxu0 %v556
    %565 = vmatprep.subr.mxu0 0.0
    %566 = vmatpush1.msra.mxu0 %v555
    %567 = vmatprep.subr.mxu0 0.0
    %568 = vmatpush1.msra.mxu0 %v554
    %569 = vmatprep.subr.mxu0 0.0
    %570 = vmatpush1.msra.mxu0 %v553
    %571 = vmatprep.subr.mxu0 0.0
    %572 = vmatpush1.msra.mxu0 %v552
    %573 = vmatprep.subr.mxu0 0.0
    %574 = vmatpush1.msra.mxu0 %v551
    %575 = vmatprep.subr.mxu0 0.0
    %576 = vmatpush1.msra.mxu0 %v550
    %577 = vmatprep.subr.mxu0 0.0
    %578 = vmatpush1.msra.mxu0 %v549
    %579 = vmatprep.subr.mxu0 0.0
    %580 = vmatpush1.msra.mxu0 %v548
    %581 = vmatprep.subr.mxu0 0.0
    %582 = vmatpush1.msra.mxu0 %v547
    %583 = vmatprep.subr.mxu0 0.0
    %584 = vmatpush1.msra.mxu0 %v546
    %585 = vmatprep.subr.mxu0 0.0
    %586 = vmatpush1.msra.mxu0 %v545
    %587 = vmatprep.subr.mxu0 0.0
    %588 = vmatpush1.msra.mxu0 %v544
    %589 = vmatprep.subr.mxu0 0.0
    %590 = vmatpush1.msra.mxu0 %v543
    %591 = vmatprep.subr.mxu0 0.0
    %592 = vmatpush2.msra.mxu0 0.0
    %593 = vmatprep.subr.mxu0 0.0
    %594 = vmatpush2.msra.mxu0 0.0
    %595 = vmatprep.subr.mxu0 0.0
    %596 = vmatpush2.msra.mxu0 0.0
    %597 = vmatprep.subr.mxu0 0.0
    %598 = vmatpush2.msra.mxu0 0.0
    %599 = vmatprep.subr.mxu0 0.0
    %600 = vmatpush2.msra.mxu0 0.0
    %601 = vmatprep.subr.mxu0 0.0
    %602 = vmatpush2.msra.mxu0 0.0
    %603 = vmatprep.subr.mxu0 0.0
    %604 = vmatpush2.msra.mxu0 0.0
    %605 = vmatprep.subr.mxu0 0.0
    %606 = vmatpush2.msra.mxu0 0.0
    %607 = vmatprep.subr.mxu0 0.0
    %608 = vmatpush2.msra.mxu0 0.0
    %609 = vmatprep.subr.mxu0 0.0
    %610 = vmatpush2.msra.mxu0 0.0
    %611 = vmatprep.subr.mxu0 0.0
    %612 = vmatpush2.msra.mxu0 0.0
    %613 = vmatprep.subr.mxu0 0.0
    %614 = vmatpush2.msra.mxu0 0.0
    %615 = vmatprep.subr.mxu0 0.0
    %616 = vmatpush2.msra.mxu0 0.0
    %617 = vmatprep.subr.mxu0 0.0
    %618 = vmatpush2.msra.mxu0 0.0
    %619 = vmatprep.subr.mxu0 0.0
    %620 = vmatpush2.msra.mxu0 0.0
    %621 = vmatprep.subr.mxu0 0.0
    %622 = vmatpush2.msra.mxu0 0.0
    %623 = vmatprep.mubr.f32.mxu0 0.0
    %624 = vmatmul.mubr.f32.gmra.mxu0 %v527
    %v625 = vpop.f32.mrf.mxu0
    %v626 = vadd.f32 0.0, %v625
    %v627 = vpop.f32.mrf.mxu0
    %628 = vmatprep.mubr.f32.mxu0 0.0
    %629 = vmatmul.mubr.f32.gmra.mxu0 %v528
    %v630 = vpop.f32.mrf.mxu0
    %v631 = vadd.f32 0.0, %v630
    %v632 = vpop.f32.mrf.mxu0
    %633 = vmatprep.mubr.f32.mxu0 0.0
    %634 = vmatmul.mubr.f32.gmra.mxu0 %v529
    %v635 = vpop.f32.mrf.mxu0
    %v636 = vadd.f32 0.0, %v635
    %v637 = vpop.f32.mrf.mxu0
    %638 = vmatprep.mubr.f32.mxu0 0.0
    %639 = vmatmul.mubr.f32.gmra.mxu0 %v530
    %v640 = vpop.f32.mrf.mxu0
    %v641 = vadd.f32 0.0, %v640
    %v642 = vpop.f32.mrf.mxu0
    %643 = vmatprep.mubr.f32.mxu0 0.0
    %644 = vmatmul.mubr.f32.gmra.mxu0 %v531
    %v645 = vpop.f32.mrf.mxu0
    %v646 = vadd.f32 0.0, %v645
    %v647 = vpop.f32.mrf.mxu0
    %648 = vmatprep.mubr.f32.mxu0 0.0
    %649 = vmatmul.mubr.f32.gmra.mxu0 %v532
    %v650 = vpop.f32.mrf.mxu0
    %v651 = vadd.f32 0.0, %v650
    %v652 = vpop.f32.mrf.mxu0
    %653 = vmatprep.mubr.f32.mxu0 0.0
    %654 = vmatmul.mubr.f32.gmra.mxu0 %v533
    %v655 = vpop.f32.mrf.mxu0
    %v656 = vadd.f32 0.0, %v655
    %v657 = vpop.f32.mrf.mxu0
    %658 = vmatprep.mubr.f32.mxu0 0.0
    %659 = vmatmul.mubr.f32.gmra.mxu0 %v534
    %v660 = vpop.f32.mrf.mxu0
    %v661 = vadd.f32 0.0, %v660
    %v662 = vpop.f32.mrf.mxu0
    %663 = vmatprep.mubr.f32.mxu0 0.0
    %664 = vmatmul.mubr.f32.gmra.mxu0 %v535
    %v665 = vpop.f32.mrf.mxu0
    %v666 = vadd.f32 0.0, %v665
    %v667 = vpop.f32.mrf.mxu0
    %668 = vmatprep.mubr.f32.mxu0 0.0
    %669 = vmatmul.mubr.f32.gmra.mxu0 %v536
    %v670 = vpop.f32.mrf.mxu0
    %v671 = vadd.f32 0.0, %v670
    %v672 = vpop.f32.mrf.mxu0
    %673 = vmatprep.mubr.f32.mxu0 0.0
    %674 = vmatmul.mubr.f32.gmra.mxu0 %v537
    %v675 = vpop.f32.mrf.mxu0
    %v676 = vadd.f32 0.0, %v675
    %v677 = vpop.f32.mrf.mxu0
    %678 = vmatprep.mubr.f32.mxu0 0.0
    %679 = vmatmul.mubr.f32.gmra.mxu0 %v538
    %v680 = vpop.f32.mrf.mxu0
    %v681 = vadd.f32 0.0, %v680
    %v682 = vpop.f32.mrf.mxu0
    %683 = vmatprep.mubr.f32.mxu0 0.0
    %684 = vmatmul.mubr.f32.gmra.mxu0 %v539
    %v685 = vpop.f32.mrf.mxu0
    %v686 = vadd.f32 0.0, %v685
    %v687 = vpop.f32.mrf.mxu0
    %688 = vmatprep.mubr.f32.mxu0 0.0
    %689 = vmatmul.mubr.f32.gmra.mxu0 %v540
    %v690 = vpop.f32.mrf.mxu0
    %v691 = vadd.f32 0.0, %v690
    %v692 = vpop.f32.mrf.mxu0
    %693 = vmatprep.mubr.f32.mxu0 0.0
    %694 = vmatmul.mubr.f32.gmra.mxu0 %v541
    %v695 = vpop.f32.mrf.mxu0
    %v696 = vadd.f32 0.0, %v695
    %v697 = vpop.f32.mrf.mxu0
    %698 = vmatprep.mubr.f32.mxu0 0.0
    %699 = vmatmul.mubr.f32.gmra.mxu0 %v542
    %v700 = vpop.f32.mrf.mxu0
    %v701 = vadd.f32 0.0, %v700
    %v702 = vpop.f32.mrf.mxu0
    %703 = vdwg.mxu0
    %704 = vst [vmem:[#allocation6] sm:$0xff] %v626
    %705 = vst [vmem:[#allocation6 + $0x8] sm:$0xff] %v631
    %706 = vst [vmem:[#allocation6 + $0x10] sm:$0xff] %v636
    %707 = vst [vmem:[#allocation6 + $0x18] sm:$0xff] %v641
    %708 = vst [vmem:[#allocation6 + $0x20] sm:$0xff] %v646
    %709 = vst [vmem:[#allocation6 + $0x28] sm:$0xff] %v651
    %710 = vst [vmem:[#allocation6 + $0x30] sm:$0xff] %v656
    %711 = vst [vmem:[#allocation6 + $0x38] sm:$0xff] %v661
    %712 = vst [vmem:[#allocation6 + $0x40] sm:$0xff] %v666
    %713 = vst [vmem:[#allocation6 + $0x48] sm:$0xff] %v671
    %714 = vst [vmem:[#allocation6 + $0x50] sm:$0xff] %v676
    %715 = vst [vmem:[#allocation6 + $0x58] sm:$0xff] %v681
    %716 = vst [vmem:[#allocation6 + $0x60] sm:$0xff] %v686
    %717 = vst [vmem:[#allocation6 + $0x68] sm:$0xff] %v691
    %718 = vst [vmem:[#allocation6 + $0x70] sm:$0xff] %v696
    %719 = vst [vmem:[#allocation6 + $0x78] sm:$0xff] %v701
    // Predicated region
    $region22: #{tpu_custom_call.1} parent=1 // pred_check
      _
    $region23: #{tpu_custom_call.1} parent=1 // pred_check_branch
      %721 = sbr.rel (0) target = $region25
    $region24: #{tpu_custom_call.1} parent=1 // pred_region
      %s723 = ssub.s32 2048, 2048
      %724 = vsyncadd [#allocation4], %s723
      %s725 = sshll.u32 [#allocation6], 4
      %s726 = int_to_ptr.vmem [resolvable:$true] %s725
      %731 = dma.vmem_to_hbm [thread:$0]  %s726, 2048, %s4, [#allocation4], 128, 128, 8
    $region25: #{tpu_custom_call.1} parent=1 // pred_fallthru
      _
    // Predicated region
    $region26: #{tpu_custom_call.1} parent=1 // pred_check
      _
    $region27: #{tpu_custom_call.1} parent=1 // pred_check_branch
      %733 = sbr.rel (0) target = $region29
    $region28: #{tpu_custom_call.1} parent=1 // pred_region
      %s735 = ssub.s32 16, 16
      %736 = vsyncadd [#allocation5], %s735
      %739 = dma.smem_to_hbm [#allocation7], 16, %s5, [#allocation5]
    $region29: #{tpu_custom_call.1} parent=1 // pred_fallthru
      _
    // Predicated region
    $region30: #{tpu_custom_call.1} parent=1 // pred_check
      _
    $region31: #{tpu_custom_call.1} parent=1 // pred_check_branch
      %741 = sbr.rel (0) target = $region33
    $region32: #{tpu_custom_call.1} parent=1 // pred_region
      %742 = dma.done [#allocation4], 2048
    $region33: #{tpu_custom_call.1} parent=1 // pred_fallthru
      _
    // Predicated region
    $region34: #{tpu_custom_call.1} parent=1 // pred_check
      _
    $region35: #{tpu_custom_call.1} parent=1 // pred_check_branch
      %744 = sbr.rel (0) target = $region37
    $region36: #{tpu_custom_call.1} parent=1 // pred_region
      %745 = dma.done [#allocation5], 16
    $region37: #{tpu_custom_call.1} parent=1 // pred_fallthru
      _
    %746 = sfence
    %747 = vsyncpa [#allocation3], 1
    %748 = vsyncpa [#allocation4], 1
    %749 = vsyncpa [#allocation5], 1

</llo_original>
